<compile_context>
chip_gen: v5e
topology: v5e:2x2
jax: 0.10.0
libtpu: 0.0.40
codegen_flags: <defaults>
</compile_context>

<pallas_src>
import math

import jax
import jax.numpy as jnp
from jax.experimental import pallas as pl
from jax.experimental.pallas import tpu as pltpu

# ----- small config consistent with the module -----
BATCH = 2
SEQ = 8
HIDDEN = 32
LN_EPS = 1e-12

_INV_SQRT2 = 1.0 / math.sqrt(2.0)


def head_transform_kernel(
    x_ref,     # (M, H)  flattened hidden_states, M = B*S
    w_ref,     # (H, H)  dense weight, stored as (in, out) so we do x @ W
    vec_ref,   # (3, H)  row 0: dense bias, row 1: LN gamma, row 2: LN beta
    out_ref,   # (M, H)
):
    x = x_ref[...].astype(jnp.float32)          # (M, H)
    w = w_ref[...].astype(jnp.float32)          # (H, H)
    vecs = vec_ref[...].astype(jnp.float32)     # (3, H)
    bias = vecs[0:1, :]                         # (1, H)
    gamma = vecs[1:2, :]                        # (1, H)
    beta = vecs[2:3, :]                         # (1, H)

    # dense: x @ W + b   (single MXU matmul, f32 accumulation)
    h = jnp.dot(x, w, preferred_element_type=jnp.float32) + bias

    # gelu (exact erf form, matching the HuggingFace implementation)
    h = h * 0.5 * (1.0 + jax.lax.erf(h * _INV_SQRT2))

    # LayerNorm over the hidden dimension (biased variance, eps inside rsqrt)
    mu = jnp.mean(h, axis=-1, keepdims=True)
    diff = h - mu
    var = jnp.mean(diff * diff, axis=-1, keepdims=True)
    y = diff * jax.lax.rsqrt(var + LN_EPS)      # rsqrt -> EUP slot
    out = y * gamma + beta

    out_ref[...] = out.astype(out_ref.dtype)


def bert_prediction_head_transform(x, params):
    """x: (B, S, H) float32. Returns (B, S, H)."""
    B, S, H = x.shape
    M = B * S

    # Flatten batch*seq so a single grid step processes the whole slab.
    x2 = x.reshape(M, H)

    # Pack the three (1, H) vectors into one (3, H) input (one DMA instead of three).
    vecs = jnp.concatenate([params["bias"], params["gamma"], params["beta"]], axis=0)

    out2 = pl.pallas_call(
        head_transform_kernel,
        out_shape=jax.ShapeDtypeStruct((M, H), x.dtype),
        grid_spec=pltpu.PrefetchScalarGridSpec(
            num_scalar_prefetch=0,
            grid=(1,),
            in_specs=[
                pl.BlockSpec((M, H), lambda i: (0, 0)),   # activations
                pl.BlockSpec((H, H), lambda i: (0, 0)),   # dense weight
                pl.BlockSpec((3, H), lambda i: (0, 0)),   # bias / gamma / beta
            ],
            out_specs=pl.BlockSpec((M, H), lambda i: (0, 0)),
        ),
        compiler_params=pltpu.CompilerParams(
            dimension_semantics=("arbitrary",),
        ),
    )(x2, params["w"], vecs)

    return out2.reshape(B, S, H)


def reference(x, params):
    """Pure-JAX reference mirroring the PyTorch forward exactly."""
    h = x @ params["w"] + params["bias"][0]
    h = h * 0.5 * (1.0 + jax.lax.erf(h * _INV_SQRT2))
    mu = jnp.mean(h, axis=-1, keepdims=True)
    var = jnp.mean((h - mu) ** 2, axis=-1, keepdims=True)
    y = (h - mu) / jnp.sqrt(var + LN_EPS)
    return y * params["gamma"][0] + params["beta"][0]


def init_params(key):
    kw, kb = jax.random.split(key, 2)
    s = 0.05
    return {
        # nn.Linear computes x @ W^T + b; we store the (in, out)-oriented matrix
        # directly so the kernel does a plain x @ W (semantically equivalent).
        "w": jax.random.normal(kw, (HIDDEN, HIDDEN), jnp.float32) * s,
        "bias": jax.random.normal(kb, (1, HIDDEN), jnp.float32) * s,
        "gamma": jnp.ones((1, HIDDEN), jnp.float32),
        "beta": jnp.zeros((1, HIDDEN), jnp.float32),
    }


if __name__ == "__main__":
    key = jax.random.PRNGKey(0)
    kx, kp = jax.random.split(key, 2)

    x = jax.random.normal(kx, (BATCH, SEQ, HIDDEN), jnp.float32)
    params = init_params(kp)

    out = bert_prediction_head_transform(x, params)
    out = jax.block_until_ready(out)

    ref = reference(x, params)
    assert out.shape == (BATCH, SEQ, HIDDEN)
    assert jnp.allclose(out, ref, atol=1e-4, rtol=1e-4), "mismatch vs reference"

    print("KERNEL_OK")
</pallas_src>

<mosaic_0001>
module attributes {stable_mosaic.version = 11 : i64} {
  func.func @head_transform_kernel(%arg0: i32, %arg1: memref<16x32xf32, #tpu.memory_space<vmem>>, %arg2: memref<32x32xf32, #tpu.memory_space<vmem>>, %arg3: memref<3x32xf32, #tpu.memory_space<vmem>>, %arg4: memref<16x32xf32, #tpu.memory_space<vmem>>) attributes {dimension_semantics = [#tpu.dimension_semantics<arbitrary>], iteration_bounds = array<i64: 1>, scalar_prefetch = 0 : i64, scratch_operands = 0 : i64, tpu.core_type = #tpu.core_type<tc>, window_params = [{pipeline_mode = #tpu.pipeline_mode<synchronous>, transform_indices = @transform_0, window_bounds = array<i64: 16, 32>}, {pipeline_mode = #tpu.pipeline_mode<synchronous>, transform_indices = @transform_1, window_bounds = array<i64: 32, 32>}, {pipeline_mode = #tpu.pipeline_mode<synchronous>, transform_indices = @transform_2, window_bounds = array<i64: 3, 32>}, {pipeline_mode = #tpu.pipeline_mode<synchronous>, transform_indices = @transform_3, window_bounds = array<i64: 16, 32>}]} {
    %c0 = arith.constant 0 : index
    %c0_0 = arith.constant 0 : index
    %0 = vector.load %arg1[%c0, %c0_0] : memref<16x32xf32, #tpu.memory_space<vmem>>, vector<16x32xf32>
    %c0_1 = arith.constant 0 : index
    %c0_2 = arith.constant 0 : index
    %1 = vector.load %arg2[%c0_1, %c0_2] : memref<32x32xf32, #tpu.memory_space<vmem>>, vector<32x32xf32>
    %c0_3 = arith.constant 0 : index
    %c0_4 = arith.constant 0 : index
    %2 = vector.load %arg3[%c0_3, %c0_4] : memref<3x32xf32, #tpu.memory_space<vmem>>, vector<3x32xf32>
    %3 = vector.extract_strided_slice %2 {offsets = [0, 0], sizes = [1, 32], strides = [1, 1]} : vector<3x32xf32> to vector<1x32xf32>
    %4 = vector.extract_strided_slice %2 {offsets = [1, 0], sizes = [1, 32], strides = [1, 1]} : vector<3x32xf32> to vector<1x32xf32>
    %5 = vector.extract_strided_slice %2 {offsets = [2, 0], sizes = [1, 32], strides = [1, 1]} : vector<3x32xf32> to vector<1x32xf32>
    %cst = arith.constant dense<0.000000e+00> : vector<16x32xf32>
    %6 = tpu.matmul %0, %1, %cst {dimension_numbers = #tpu.dot_dimension_numbers<[1], [0], [0], [1], [0, 0, 1, 1], [], []>} : vector<16x32xf32>, vector<32x32xf32>, vector<16x32xf32> -> vector<16x32xf32>
    %7 = vector.broadcast %3 : vector<1x32xf32> to vector<16x32xf32>
    %8 = arith.addf %6, %7 : vector<16x32xf32>
    %cst_5 = arith.constant 5.000000e-01 : f32
    %9 = vector.broadcast %cst_5 : f32 to vector<16x32xf32>
    %10 = arith.mulf %8, %9 : vector<16x32xf32>
    %cst_6 = arith.constant 0.707106769 : f32
    %11 = vector.broadcast %cst_6 : f32 to vector<16x32xf32>
    %12 = arith.mulf %8, %11 : vector<16x32xf32>
    %13 = math.erf %12 : vector<16x32xf32>
    %cst_7 = arith.constant 1.000000e+00 : f32
    %14 = vector.broadcast %cst_7 : f32 to vector<16x32xf32>
    %15 = arith.addf %14, %13 : vector<16x32xf32>
    %16 = arith.mulf %10, %15 : vector<16x32xf32>
    %cst_8 = arith.constant dense<0.000000e+00> : vector<16xf32>
    %17 = vector.multi_reduction <add>, %16, %cst_8 [1] : vector<16x32xf32> to vector<16xf32>
    %18 = vector.shape_cast %17 : vector<16xf32> to vector<16x1xf32>
    %cst_9 = arith.constant 3.200000e+01 : f32
    %19 = vector.broadcast %cst_9 : f32 to vector<16x1xf32>
    %20 = arith.divf %18, %19 : vector<16x1xf32>
    %21 = vector.broadcast %20 : vector<16x1xf32> to vector<16x32xf32>
    %22 = arith.subf %16, %21 : vector<16x32xf32>
    %23 = arith.mulf %22, %22 : vector<16x32xf32>
    %cst_10 = arith.constant dense<0.000000e+00> : vector<16xf32>
    %24 = vector.multi_reduction <add>, %23, %cst_10 [1] : vector<16x32xf32> to vector<16xf32>
    %25 = vector.shape_cast %24 : vector<16xf32> to vector<16x1xf32>
    %cst_11 = arith.constant 3.200000e+01 : f32
    %26 = vector.broadcast %cst_11 : f32 to vector<16x1xf32>
    %27 = arith.divf %25, %26 : vector<16x1xf32>
    %cst_12 = arith.constant 9.99999996E-13 : f32
    %28 = vector.broadcast %cst_12 : f32 to vector<16x1xf32>
    %29 = arith.addf %27, %28 : vector<16x1xf32>
    %30 = math.rsqrt %29 : vector<16x1xf32>
    %31 = vector.broadcast %30 : vector<16x1xf32> to vector<16x32xf32>
    %32 = arith.mulf %22, %31 : vector<16x32xf32>
    %33 = vector.broadcast %4 : vector<1x32xf32> to vector<16x32xf32>
    %34 = arith.mulf %32, %33 : vector<16x32xf32>
    %35 = vector.broadcast %5 : vector<1x32xf32> to vector<16x32xf32>
    %36 = arith.addf %34, %35 : vector<16x32xf32>
    %c0_13 = arith.constant 0 : index
    %c0_14 = arith.constant 0 : index
    %37 = vector.load %arg4[%c0_13, %c0_14] : memref<16x32xf32, #tpu.memory_space<vmem>>, vector<16x32xf32>
    tpu.vector_store %arg4[%c0_13, %c0_14], %36 {strides = array<i32>} : memref<16x32xf32, #tpu.memory_space<vmem>>, vector<16x32xf32>,
    return
  }
  func.func @transform_0(%arg0: i32) -> (i32, i32) {
    %c0_i32 = arith.constant 0 : i32
    %c0_i32_0 = arith.constant 0 : i32
    %c0_i32_1 = arith.constant 0 : i32
    return %c0_i32, %c0_i32_0 : i32, i32
  }
  func.func @transform_1(%arg0: i32) -> (i32, i32) {
    %c0_i32 = arith.constant 0 : i32
    %c0_i32_0 = arith.constant 0 : i32
    %c0_i32_1 = arith.constant 0 : i32
    return %c0_i32, %c0_i32_0 : i32, i32
  }
  func.func @transform_2(%arg0: i32) -> (i32, i32) {
    %c0_i32 = arith.constant 0 : i32
    %c0_i32_0 = arith.constant 0 : i32
    %c0_i32_1 = arith.constant 0 : i32
    return %c0_i32, %c0_i32_0 : i32, i32
  }
  func.func @transform_3(%arg0: i32) -> (i32, i32) {
    %c0_i32 = arith.constant 0 : i32
    %c0_i32_0 = arith.constant 0 : i32
    %c0_i32_1 = arith.constant 0 : i32
    return %c0_i32, %c0_i32_0 : i32, i32
  }
}

</mosaic_0001>

<llo_original>
// kernel: tpu_custom_call.1
$region0: #{tpu_custom_call.1}
  #allocation0 [shape = 'u32[]', space=smem, size = 0x4, offset = 0x4, fixed_abs, tag = 'smem constant byte address 0x4 - core index']
  #allocation1 [shape = 'u32[72,128]{1,0:T(1,128)}', space=vmem, size = 0x9000, scoped, tag = 'internal scratch']
  %s0 = inlined_call_operand.hbm [shape: f32[16,32], index: 0, kind: input, shape index: {}]
  %s1 = inlined_call_operand.hbm [shape: f32[32,32], index: 1, kind: input, shape index: {}]
  %s2 = inlined_call_operand.hbm [shape: f32[3,32], index: 2, kind: input, shape index: {}]
  %s3 = inlined_call_operand.hbm [shape: f32[16,32], index: 3, kind: output, shape index: {}]
  %s4 = sld [smem:[#allocation0]]
  $region34: #{tpu_custom_call.1} parent=0
    _
  %s6 = ssub.s32 1, %s4
  %s7 = scalar_select 0, %s6, %s4
  $region1: #{tpu_custom_call.1} parent=0
    #allocation2 [shape = 'u8[8192]{0}', space=vmem, size = 0x2000, scoped, tag = 'input window, operand 0, single buffered']
    #allocation3 [shape = 's32[1]{0}', space=sflag, size = 0x4, scoped, tag = 'scoped memory for tpu_custom_call.1']
    #allocation4 [shape = 's32[1]{0}', space=sflag, size = 0x4, scoped, tag = 'scoped memory for tpu_custom_call.1']
    #allocation5 [shape = 'u8[16384]{0}', space=vmem, size = 0x4000, scoped, tag = 'input window, operand 1, single buffered']
    #allocation6 [shape = 's32[1]{0}', space=sflag, size = 0x4, scoped, tag = 'scoped memory for tpu_custom_call.1']
    #allocation7 [shape = 'u8[2048]{0}', space=vmem, size = 0x800, scoped, tag = 'input window, operand 2, single buffered']
    #allocation8 [shape = 'u8[8192]{0}', space=vmem, size = 0x2000, scoped, tag = 'output window, operand 0, single buffered']
    %8 = vsyncpa [#allocation3], 0
    %9 = vsyncpa [#allocation6], 0
    %10 = vsyncpa [#allocation4], 0
    // Predicated region
    $region2: #{tpu_custom_call.1} parent=1 // pred_check
      _
    $region3: #{tpu_custom_call.1} parent=1 // pred_check_branch
      %12 = sbr.rel (0) target = $region5
    $region4: #{tpu_custom_call.1} parent=1 // pred_region
      %14 = vsyncadd [#allocation3], 0
      %s15 = sshll.u32 %s0, 4
      %s16 = int_to_ptr.hbm [resolvable:$true] %s15
      %s17 = sshll.u32 [#allocation2], 4
      %s18 = int_to_ptr.vmem [resolvable:$true] %s17
      %23 = dma.hbm_to_vmem [thread:$0]  %s16, 256, %s18, [#allocation3], 128, 128, 8
    $region5: #{tpu_custom_call.1} parent=1 // pred_fallthru
      _
    // Predicated region
    $region6: #{tpu_custom_call.1} parent=1 // pred_check
      _
    $region7: #{tpu_custom_call.1} parent=1 // pred_check_branch
      %25 = sbr.rel (0) target = $region9
    $region8: #{tpu_custom_call.1} parent=1 // pred_region
      %27 = vsyncadd [#allocation6], 0
      %s28 = sshll.u32 %s1, 4
      %s29 = int_to_ptr.hbm [resolvable:$true] %s28
      %s30 = sshll.u32 [#allocation5], 4
      %s31 = int_to_ptr.vmem [resolvable:$true] %s30
      %36 = dma.hbm_to_vmem [thread:$0]  %s29, 512, %s31, [#allocation6], 128, 128, 8
    $region9: #{tpu_custom_call.1} parent=1 // pred_fallthru
      _
    // Predicated region
    $region10: #{tpu_custom_call.1} parent=1 // pred_check
      _
    $region11: #{tpu_custom_call.1} parent=1 // pred_check_branch
      %38 = sbr.rel (0) target = $region13
    $region12: #{tpu_custom_call.1} parent=1 // pred_region
      %40 = vsyncadd [#allocation6], 0
      %s42 = sshll.u32 %s2, 4
      %s43 = int_to_ptr.hbm [resolvable:$true] %s42
      %s44 = sshll.u32 [#allocation7], 4
      %s45 = int_to_ptr.vmem [resolvable:$true] %s44
      %47 = dma.hbm_to_vmem [thread:$0]  %s43, 64, %s45, [#allocation6]
    $region13: #{tpu_custom_call.1} parent=1 // pred_fallthru
      _
    // Predicated region
    $region14: #{tpu_custom_call.1} parent=1 // pred_check
      _
    $region15: #{tpu_custom_call.1} parent=1 // pred_check_branch
      %49 = sbr.rel (0) target = $region17
    $region16: #{tpu_custom_call.1} parent=1 // pred_region
      %51 = dma.done [#allocation3], 256
    $region17: #{tpu_custom_call.1} parent=1 // pred_fallthru
      _
    // Predicated region
    $region18: #{tpu_custom_call.1} parent=1 // pred_check
      _
    $region19: #{tpu_custom_call.1} parent=1 // pred_check_branch
      %53 = sbr.rel (0) target = $region21
    $region20: #{tpu_custom_call.1} parent=1 // pred_region
      %55 = dma.done [#allocation6], 512
    $region21: #{tpu_custom_call.1} parent=1 // pred_fallthru
      _
    // Predicated region
    $region22: #{tpu_custom_call.1} parent=1 // pred_check
      _
    $region23: #{tpu_custom_call.1} parent=1 // pred_check_branch
      %57 = sbr.rel (0) target = $region25
    $region24: #{tpu_custom_call.1} parent=1 // pred_region
      %59 = dma.done [#allocation6], 64
    $region25: #{tpu_custom_call.1} parent=1 // pred_fallthru
      _
    %v60 = vld [vmem:[#allocation2] sm:$0xff]
    %v61 = vld [vmem:[#allocation2 + $0x8] sm:$0xff]
    %v62 = vld [vmem:[#allocation5] sm:$0xff]
    %v63 = vld [vmem:[#allocation5 + $0x8] sm:$0xff]
    %v64 = vld [vmem:[#allocation5 + $0x10] sm:$0xff]
    %v65 = vld [vmem:[#allocation5 + $0x18] sm:$0xff]
    %v66 = vld [vmem:[#allocation7] sm:$0x7]
    %v67 = vperm.slane %v66, 0
    %vm68 = vcmask 261120
    %v70 = vsel %vm68, %v60, 0
    %v73 = vsel %vm68, %v61, 0
    %75 = vmatpush.msra.mxu0 0.0
    %76 = vmatpush.msra.mxu0 0.0
    %77 = vmatpush.msra.mxu0 0.0
    %78 = vmatpush.msra.mxu0 0.0
    %79 = vmatpush.msra.mxu0 0.0
    %80 = vmatpush.msra.mxu0 0.0
    %81 = vmatpush.msra.mxu0 0.0
    %82 = vmatpush.msra.mxu0 0.0
    %83 = vmatpush.msra.mxu0 0.0
    %84 = vmatpush.msra.mxu0 0.0
    %85 = vmatpush.msra.mxu0 0.0
    %86 = vmatpush.msra.mxu0 0.0
    %87 = vmatpush.msra.mxu0 %v65
    %88 = vmatpush.msra.mxu0 %v64
    %89 = vmatpush.msra.mxu0 %v63
    %90 = vmatpush.msra.mxu0 %v62
    %91 = vmatmul.f32.gmra.mxu0 %v70
    %v92 = vpop.f32.mrf.mxu0
    %v93 = vadd.f32 %v67, %v92
    %94 = vmatmul.f32.gmra.mxu0 %v73
    %v95 = vpop.f32.mrf.mxu0
    %v96 = vadd.f32 %v67, %v95
    %97 = vdwg.mxu0
    %v98 = vmul.f32 %v93, 0.5
    %v99 = vmul.f32 %v96, 0.5
    %v100 = vmul.f32 %v93, 0.70710677
    %v101 = vmul.f32 %v96, 0.70710677
    %v102 = vmul.f32 %v100, %v100
    %v103 = vmin.f32 16.0, %v102
    %v104 = vmul.f32 %v103, 2.1237322e-06
    %v105 = vadd.f32 %v104, 0.00028619796
    %v106 = vmul.f32 %v103, %v105
    %v107 = vadd.f32 %v106, 0.0036580483
    %v108 = vmul.f32 %v103, %v107
    %v109 = vadd.f32 %v108, 0.05243302
    %v110 = vmul.f32 %v103, %v109
    %v111 = vadd.f32 %v110, 0.18741608
    %v112 = vmul.f32 %v103, %v111
    %v113 = vadd.f32 %v112, 1.1283791
    %v114 = vmul.f32 %v100, %v113
    %v115 = vmul.f32 %v103, 3.8918573e-05
    %v116 = vadd.f32 %v115, 0.001143296
    %v117 = vmul.f32 %v103, %v116
    %v118 = vadd.f32 %v117, 0.014752088
    %v119 = vmul.f32 %v103, %v118
    %v120 = vadd.f32 %v119, 0.112945676
    %v121 = vmul.f32 %v103, %v120
    %v122 = vadd.f32 %v121, 0.4994258
    %v123 = vmul.f32 %v103, %v122
    %v124 = vadd.f32 %v123, 1.0
    %v125 = vrcp.pop %v124
    %v126 = vmul.f32 %v124, %v125
    %v127 = vsub.f32 1.0, %v126
    %v128 = vmul.f32 %v125, %v127
    %v129 = vadd.f32 %v125, %v128
    %vm130 = vweird.f32 %v124
    %vm131 = vweird.f32 %v125
    %vm132 = vmor %vm130, %vm131
    %v133 = vsel %vm132, %v125, %v129
    %v134 = vand.u32 2147483647, %v124
    %vm135 = vcmp.eq.f32.partialorder %v134, 8.507059e+37
    %v136 = vand.u32 %v124, 2147483648
    %v137 = vor.u32 1.1754944e-38, %v136
    %v138 = vsel %vm135, %v137, %v133
    %v139 = vmul.f32 %v114, %v138
    %v140 = vmin.f32 %v139, 1.0
    %v141 = vmax.f32 %v140, -1.0
    %v142 = vmul.f32 %v101, %v101
    %v143 = vmin.f32 16.0, %v142
    %v144 = vmul.f32 %v143, 2.1237322e-06
    %v145 = vadd.f32 %v144, 0.00028619796
    %v146 = vmul.f32 %v143, %v145
    %v147 = vadd.f32 %v146, 0.0036580483
    %v148 = vmul.f32 %v143, %v147
    %v149 = vadd.f32 %v148, 0.05243302
    %v150 = vmul.f32 %v143, %v149
    %v151 = vadd.f32 %v150, 0.18741608
    %v152 = vmul.f32 %v143, %v151
    %v153 = vadd.f32 %v152, 1.1283791
    %v154 = vmul.f32 %v101, %v153
    %v155 = vmul.f32 %v143, 3.8918573e-05
    %v156 = vadd.f32 %v155, 0.001143296
    %v157 = vmul.f32 %v143, %v156
    %v158 = vadd.f32 %v157, 0.014752088
    %v159 = vmul.f32 %v143, %v158
    %v160 = vadd.f32 %v159, 0.112945676
    %v161 = vmul.f32 %v143, %v160
    %v162 = vadd.f32 %v161, 0.4994258
    %v163 = vmul.f32 %v143, %v162
    %v164 = vadd.f32 %v163, 1.0
    %v165 = vrcp.pop %v164
    %v166 = vmul.f32 %v164, %v165
    %v167 = vsub.f32 1.0, %v166
    %v168 = vmul.f32 %v165, %v167
    %v169 = vadd.f32 %v165, %v168
    %vm170 = vweird.f32 %v164
    %vm171 = vweird.f32 %v165
    %vm172 = vmor %vm170, %vm171
    %v173 = vsel %vm172, %v165, %v169
    %v174 = vand.u32 2147483647, %v164
    %vm175 = vcmp.eq.f32.partialorder %v174, 8.507059e+37
    %v176 = vand.u32 %v164, 2147483648
    %v177 = vor.u32 1.1754944e-38, %v176
    %v178 = vsel %vm175, %v177, %v173
    %v179 = vmul.f32 %v154, %v178
    %v180 = vmin.f32 %v179, 1.0
    %v181 = vmax.f32 %v180, -1.0
    %v182 = vadd.f32 %v141, 1.0
    %v183 = vadd.f32 %v181, 1.0
    %v184 = vmul.f32 %v98, %v182
    %v185 = vmul.f32 %v99, %v183
    %v186 = vsel %vm68, %v184, 0.0
    %187 = vadd.xlane.f32.xlu0 %v186
    %v188 = vpop.xlane.xlu0 %187
    %v189 = vsel %vm68, %v185, 0.0
    %190 = vadd.xlane.f32.xlu0 %v189
    %v191 = vpop.xlane.xlu0 %190
    %v192 = vrcp.pop 32.0
    %v193 = vmul.f32 32.0, %v192
    %v194 = vsub.f32 1.0, %v193
    %v195 = vmul.f32 %v192, %v194
    %v196 = vadd.f32 %v192, %v195
    %vm197 = vweird.f32 %v192
    %v198 = vsel %vm197, %v192, %v196
    %v199 = vmul.f32 %v188, %v198
    %v200 = vmul.f32 %v191, %v198
    %v201 = vsub.f32 %v184, %v199
    %v202 = vsub.f32 %v185, %v200
    %v203 = vmul.f32 %v201, %v201
    %v204 = vmul.f32 %v202, %v202
    %v205 = vsel %vm68, %v203, 0.0
    %206 = vadd.xlane.f32.xlu0 %v205
    %v207 = vpop.xlane.xlu0 %206
    %v208 = vsel %vm68, %v204, 0.0
    %209 = vadd.xlane.f32.xlu0 %v208
    %v210 = vpop.xlane.xlu0 %209
    %v211 = vmul.f32 %v207, %v198
    %v212 = vmul.f32 %v210, %v198
    %v213 = vadd.f32 %v211, 1e-12
    %v214 = vadd.f32 %v212, 1e-12
    %v215 = vrsqrt.pop %v213
    %v216 = vmul.f32 %v215, %v213
    %v217 = vmul.f32 %v216, %v215
    %v218 = vmul.f32 0.5, %v217
    %v219 = vsub.f32 1.5, %v218
    %v220 = vmul.f32 %v215, %v219
    %vm221 = vweird.f32 %v213
    %vm222 = vweird.f32 %v215
    %vm223 = vmor %vm221, %vm222
    %v224 = vsel %vm223, %v215, %v220
    %v225 = vrsqrt.pop %v214
    %v226 = vmul.f32 %v225, %v214
    %v227 = vmul.f32 %v226, %v225
    %v228 = vmul.f32 0.5, %v227
    %v229 = vsub.f32 1.5, %v228
    %v230 = vmul.f32 %v225, %v229
    %vm231 = vweird.f32 %v214
    %vm232 = vweird.f32 %v225
    %vm233 = vmor %vm231, %vm232
    %v234 = vsel %vm233, %v225, %v230
    %v235 = vmul.f32 %v201, %v224
    %v236 = vmul.f32 %v202, %v234
    %v237 = vperm.slane %v66, 1
    %v238 = vmul.f32 %v235, %v237
    %v239 = vmul.f32 %v236, %v237
    %v240 = vperm.slane %v66, 2
    %v241 = vadd.f32 %v238, %v240
    %v242 = vadd.f32 %v239, %v240
    %243 = vst.msk [vmem:[#allocation8] sm:$0xff] %vm68, %v241
    %244 = vst.msk [vmem:[#allocation8 + $0x8] sm:$0xff] %vm68, %v242
    // Predicated region
    $region26: #{tpu_custom_call.1} parent=1 // pred_check
      _
    $region27: #{tpu_custom_call.1} parent=1 // pred_check_branch
      %246 = sbr.rel (0) target = $region29
    $region28: #{tpu_custom_call.1} parent=1 // pred_region
      %248 = vsyncadd [#allocation4], 0
      %s249 = sshll.u32 [#allocation8], 4
      %s250 = int_to_ptr.vmem [resolvable:$true] %s249
      %s251 = sshll.u32 %s3, 4
      %s252 = int_to_ptr.hbm [resolvable:$true] %s251
      %257 = dma.vmem_to_hbm [thread:$0]  %s250, 256, %s252, [#allocation4], 128, 128, 8
    $region29: #{tpu_custom_call.1} parent=1 // pred_fallthru
      _
    // Predicated region
    $region30: #{tpu_custom_call.1} parent=1 // pred_check
      _
    $region31: #{tpu_custom_call.1} parent=1 // pred_check_branch
      %259 = sbr.rel (0) target = $region33
    $region32: #{tpu_custom_call.1} parent=1 // pred_region
      %261 = dma.done [#allocation4], 256
    $region33: #{tpu_custom_call.1} parent=1 // pred_fallthru
      _
    %262 = vsyncpa [#allocation3], 1
    %263 = vsyncpa [#allocation6], 1
    %264 = vsyncpa [#allocation4], 1

</llo_original>
